<compile_context>
chip_gen: v7x
topology: tpu7x:2x2x1
jax: 0.10.0
libtpu: 0.0.40
codegen_flags: <defaults>
</compile_context>

<pallas_src>
import jax
import jax.numpy as jnp
from jax.experimental import pallas as pl
from jax.experimental.pallas import tpu as pltpu


def _add_kernel(x1_ref, x2_ref, o_ref):
    # Elementwise add on the current VMEM tile (VPU).
    o_ref[...] = x1_ref[...] + x2_ref[...]


_TARGET_BLOCK_BYTES = 4 * 1024 * 1024   # per array per grid step
_LANE_CAP = 8192                        # widest lane-dense slab we try
_MIN_GRID_STEPS = 4                     # below this, pipelining can't hide DMA
_VMEM_LIMIT_BYTES = 48 << 20            # 3 arrays x 2 bufs x 4 MiB = 24 MiB + scratch


def _sublane_multiple(dtype) -> int:
    # 32-bit dtypes pack 8 rows per vreg, 16-bit pack 16, 8-bit pack 32.
    return max(8, 32 // jnp.dtype(dtype).itemsize)


def _compiler_params():
    return pltpu.CompilerParams(
        dimension_semantics=("parallel",),      # shard the grid over v7x's 2 TCs
        vmem_limit_bytes=_VMEM_LIMIT_BYTES,
    )


def _cost(n, itemsize):
    # 2 reads + 1 write, one add per element.
    return pl.CostEstimate(flops=n, transcendentals=0, bytes_accessed=3 * n * itemsize)


def _add_2d(x1f, x2f, tile_rows, lane, n, itemsize):
    rows = x1f.shape[0]
    grid = (pl.cdiv(rows, tile_rows),)          # ragged last row-block masked by Pallas
    return pl.pallas_call(
        _add_kernel,
        out_shape=jax.ShapeDtypeStruct((rows, lane), x1f.dtype),
        grid_spec=pltpu.PrefetchScalarGridSpec(
            num_scalar_prefetch=0,
            grid=grid,
            in_specs=[
                pl.BlockSpec((tile_rows, lane), lambda i: (i, 0)),
                pl.BlockSpec((tile_rows, lane), lambda i: (i, 0)),
            ],
            out_specs=pl.BlockSpec((tile_rows, lane), lambda i: (i, 0)),
        ),
        compiler_params=_compiler_params(),
        cost_estimate=_cost(n, itemsize),
    )(x1f, x2f)


def _add_1d(x1f, x2f, chunk, n, itemsize):
    grid = (pl.cdiv(n, chunk),)                 # ragged tail masked by Pallas
    return pl.pallas_call(
        _add_kernel,
        out_shape=jax.ShapeDtypeStruct((n,), x1f.dtype),
        grid_spec=pltpu.PrefetchScalarGridSpec(
            num_scalar_prefetch=0,
            grid=grid,
            in_specs=[
                pl.BlockSpec((chunk,), lambda i: (i,)),
                pl.BlockSpec((chunk,), lambda i: (i,)),
            ],
            out_specs=pl.BlockSpec((chunk,), lambda i: (i,)),
        ),
        compiler_params=_compiler_params(),
        cost_estimate=_cost(n, itemsize),
    )(x1f, x2f)


def pallas_add(x1, x2, *, force_pallas: bool = False):
    """Elementwise add: x1 + x2 (same shape, same dtype).

    force_pallas=True bypasses the small-workload / tiny-grid fallbacks so the
    Pallas path can be exercised and validated on small inputs.
    """
    # TODO(synk): torch `+` also supports broadcasting and dtype promotion; this
    # kernel implements the same-shape / same-dtype case only.
    assert x1.shape == x2.shape and x1.dtype == x2.dtype
    orig_shape = x1.shape
    n = x1.size
    itemsize = jnp.dtype(x1.dtype).itemsize
    sub = _sublane_multiple(x1.dtype)

    if n == 0:
        return x1 + x2

    # Widest lane count (multiple of 128, <= _LANE_CAP) that divides n exactly,
    # so the flat data is viewed as a lane-dense (rows, lane) slab with NO pad
    # and NO trailing slice (reshape of contiguous data is free).
    lane = 0
    for cand in range(min(_LANE_CAP, (n // 128) * 128), 127, -128):
        if n % cand == 0:
            lane = cand
            break

    if lane:
        rows = n // lane
        # Rows per block: ~_TARGET_BLOCK_BYTES per array, dtype-aligned sublanes.
        tile_rows = max(sub, (_TARGET_BLOCK_BYTES // (lane * itemsize)) // sub * sub)
        if pl.cdiv(rows, tile_rows) < _MIN_GRID_STEPS:
            # Shrink blocks to keep >= _MIN_GRID_STEPS pipeline stages busy ...
            tile_rows = (rows // _MIN_GRID_STEPS) // sub * sub
            if tile_rows < sub:
                # ... or the workload is too small to pipeline: XLA's fused add wins.
                if not force_pallas:
                    return x1 + x2
                tile_rows = rows  # single block; block dim == full dim is always legal
        out = _add_2d(x1.reshape(rows, lane), x2.reshape(rows, lane),
                      tile_rows, lane, n, itemsize)
        return out.reshape(orig_shape)

    # n is not a multiple of 128: stream the flat array with 1D blocks instead of
    # falling off a performance cliff. Only worth it with enough data to pipeline.
    vreg_elems = sub * 128
    chunk = max(vreg_elems,
                (_TARGET_BLOCK_BYTES // itemsize) // vreg_elems * vreg_elems)
    if pl.cdiv(n, chunk) < _MIN_GRID_STEPS:
        chunk = (n // _MIN_GRID_STEPS) // vreg_elems * vreg_elems
        if chunk < vreg_elems:
            if not force_pallas:
                return x1 + x2
            chunk = min(n, vreg_elems)  # chunk == n (full dim) when n < one vreg row
    out = _add_1d(x1.reshape(n), x2.reshape(n), chunk, n, itemsize)
    return out.reshape(orig_shape)


if __name__ == "__main__":
    key = jax.random.PRNGKey(0)
    k1, k2, k3, k4 = jax.random.split(key, 4)

    # Small NCHW-style feature maps consistent with the Add module's typical use.
    x1 = jax.random.normal(k1, (2, 4, 16, 16), dtype=jnp.float32)
    x2 = jax.random.normal(k2, (2, 4, 16, 16), dtype=jnp.float32)

    y_default = pallas_add(x1, x2)                    # small -> XLA fast path
    y_forced = pallas_add(x1, x2, force_pallas=True)  # exercises the Pallas kernel
    jax.block_until_ready((y_default, y_forced))
    ref_small = x1 + x2
    assert jnp.allclose(y_default, ref_small, atol=1e-6, rtol=1e-6), "fast path mismatch"
    assert jnp.allclose(y_forced, ref_small, atol=1e-6, rtol=1e-6), "pallas path mismatch"

    # Medium-sized check that exercises the tiled, pipelined multi-step grid
    # (16 MiB per input -> lane=8192, 128-row blocks, 4 grid steps).
    a = jax.random.normal(k3, (16, 16, 64, 64), dtype=jnp.float32)
    b = jax.random.normal(k4, (16, 16, 64, 64), dtype=jnp.float32)
    y_tiled = pallas_add(a, b)
    jax.block_until_ready(y_tiled)
    assert jnp.allclose(y_tiled, a + b, atol=1e-6, rtol=1e-6), "tiled path mismatch"

    print("KERNEL_OK")
</pallas_src>

<mosaic_0001>
module attributes {stable_mosaic.version = 11 : i64} {
  func.func @_add_kernel(%arg0: i32, %arg1: memref<1x2048xf32, #tpu.memory_space<vmem>>, %arg2: memref<1x2048xf32, #tpu.memory_space<vmem>>, %arg3: memref<1x2048xf32, #tpu.memory_space<vmem>>) attributes {dimension_semantics = [#tpu.dimension_semantics<parallel>], iteration_bounds = array<i64: 1>, scalar_prefetch = 0 : i64, scratch_operands = 0 : i64, tpu.core_type = #tpu.core_type<tc>, window_params = [{transform_indices = @transform_0, window_bounds = array<i64: 1, 2048>}, {transform_indices = @transform_1, window_bounds = array<i64: 1, 2048>}, {transform_indices = @transform_2, window_bounds = array<i64: 1, 2048>}]} {
    %c0 = arith.constant 0 : index
    %c0_0 = arith.constant 0 : index
    %0 = vector.load %arg1[%c0, %c0_0] : memref<1x2048xf32, #tpu.memory_space<vmem>>, vector<1x2048xf32>
    %c0_1 = arith.constant 0 : index
    %c0_2 = arith.constant 0 : index
    %1 = vector.load %arg2[%c0_1, %c0_2] : memref<1x2048xf32, #tpu.memory_space<vmem>>, vector<1x2048xf32>
    %2 = arith.addf %0, %1 : vector<1x2048xf32>
    %c0_3 = arith.constant 0 : index
    %c0_4 = arith.constant 0 : index
    %3 = vector.load %arg3[%c0_3, %c0_4] : memref<1x2048xf32, #tpu.memory_space<vmem>>, vector<1x2048xf32>
    tpu.vector_store %arg3[%c0_3, %c0_4], %2 {strides = array<i32>} : memref<1x2048xf32, #tpu.memory_space<vmem>>, vector<1x2048xf32>,
    return
  }
  func.func @transform_0(%arg0: i32) -> (i32, i32) {
    %c0_i32 = arith.constant 0 : i32
    %c0_i32_0 = arith.constant 0 : i32
    return %arg0, %c0_i32 : i32, i32
  }
  func.func @transform_1(%arg0: i32) -> (i32, i32) {
    %c0_i32 = arith.constant 0 : i32
    %c0_i32_0 = arith.constant 0 : i32
    return %arg0, %c0_i32 : i32, i32
  }
  func.func @transform_2(%arg0: i32) -> (i32, i32) {
    %c0_i32 = arith.constant 0 : i32
    %c0_i32_0 = arith.constant 0 : i32
    return %arg0, %c0_i32 : i32, i32
  }
}

</mosaic_0001>

<llo_original>
// kernel: tpu_custom_call.1
$region0: #{tpu_custom_call.1}
  #allocation0 [shape = 'u32[]', space=smem, size = 0x4, offset = 0x4, fixed_abs, tag = 'smem constant byte address 0x4 - core index']
  #allocation1 [shape = 'u32[144,128]{1,0:T(1,128)}', space=vmem, size = 0x12000, scoped, tag = 'internal scratch']
  %s0 = inlined_call_operand.hbm [shape: f32[1,2048], index: 0, kind: input, shape index: {}]
  %s1 = inlined_call_operand.hbm [shape: f32[1,2048], index: 1, kind: input, shape index: {}]
  %s2 = inlined_call_operand.hbm [shape: f32[1,2048], index: 2, kind: output, shape index: {}]
  %s3 = sld [smem:[#allocation0]]
  $region26: #{tpu_custom_call.1} parent=0
    _
  %s5 = ssub.s32 1, %s3
  %s6 = scalar_select 0, %s5, %s3
  $region1: #{tpu_custom_call.1} parent=0
    #allocation2 [shape = 'u8[8192]{0}', space=vmem, size = 0x2000, scoped, tag = 'input window, operand 0, single buffered']
    #allocation3 [shape = 's32[1]{0}', space=sflag, size = 0x4, scoped, tag = 'scoped memory for tpu_custom_call.1']
    #allocation4 [shape = 's32[1]{0}', space=sflag, size = 0x4, scoped, tag = 'scoped memory for tpu_custom_call.1']
    #allocation5 [shape = 'u8[8192]{0}', space=vmem, size = 0x2000, scoped, tag = 'input window, operand 1, single buffered']
    #allocation6 [shape = 's32[1]{0}', space=sflag, size = 0x4, scoped, tag = 'scoped memory for tpu_custom_call.1']
    #allocation7 [shape = 'u8[8192]{0}', space=vmem, size = 0x2000, scoped, tag = 'output window, operand 0, single buffered']
    %7 = vsyncpa [#allocation3], 0
    %8 = vsyncpa [#allocation6], 0
    %9 = vsyncpa [#allocation4], 0
    // Predicated region
    $region2: #{tpu_custom_call.1} parent=1 // pred_check
      _
    $region3: #{tpu_custom_call.1} parent=1 // pred_check_branch
      %11 = sbr.rel (0) target = $region5
    $region4: #{tpu_custom_call.1} parent=1 // pred_region
      %s13 = ssub.s32 256, 256
      %14 = vsyncadd [#allocation3], %s13
      %s16 = sshll.u32 [#allocation2], 4
      %s17 = int_to_ptr.vmem [resolvable:$true] %s16
      %19 = dma.hbm_to_vmem [thread:$0]  %s0, 256, %s17, [#allocation3]
    $region5: #{tpu_custom_call.1} parent=1 // pred_fallthru
      _
    // Predicated region
    $region6: #{tpu_custom_call.1} parent=1 // pred_check
      _
    $region7: #{tpu_custom_call.1} parent=1 // pred_check_branch
      %21 = sbr.rel (0) target = $region9
    $region8: #{tpu_custom_call.1} parent=1 // pred_region
      %s23 = ssub.s32 256, 256
      %24 = vsyncadd [#allocation6], %s23
      %s26 = sshll.u32 [#allocation5], 4
      %s27 = int_to_ptr.vmem [resolvable:$true] %s26
      %29 = dma.hbm_to_vmem [thread:$0]  %s1, 256, %s27, [#allocation6]
    $region9: #{tpu_custom_call.1} parent=1 // pred_fallthru
      _
    // Predicated region
    $region10: #{tpu_custom_call.1} parent=1 // pred_check
      _
    $region11: #{tpu_custom_call.1} parent=1 // pred_check_branch
      %31 = sbr.rel (0) target = $region13
    $region12: #{tpu_custom_call.1} parent=1 // pred_region
      %32 = dma.done [#allocation3], 256
    $region13: #{tpu_custom_call.1} parent=1 // pred_fallthru
      _
    // Predicated region
    $region14: #{tpu_custom_call.1} parent=1 // pred_check
      _
    $region15: #{tpu_custom_call.1} parent=1 // pred_check_branch
      %34 = sbr.rel (0) target = $region17
    $region16: #{tpu_custom_call.1} parent=1 // pred_region
      %35 = dma.done [#allocation6], 256
    $region17: #{tpu_custom_call.1} parent=1 // pred_fallthru
      _
    %v36 = vld [vmem:[#allocation2] sm:$0xff]
    %v37 = vld [vmem:[#allocation2 + $0x8] sm:$0xff]
    %v38 = vld [vmem:[#allocation5] sm:$0xff]
    %v39 = vld [vmem:[#allocation5 + $0x8] sm:$0xff]
    %v40 = vadd.f32 %v36, %v38
    %v41 = vadd.f32 %v37, %v39
    %42 = vst [vmem:[#allocation7] sm:$0xff] %v40
    %43 = vst [vmem:[#allocation7 + $0x8] sm:$0xff] %v41
    // Predicated region
    $region18: #{tpu_custom_call.1} parent=1 // pred_check
      _
    $region19: #{tpu_custom_call.1} parent=1 // pred_check_branch
      %45 = sbr.rel (0) target = $region21
    $region20: #{tpu_custom_call.1} parent=1 // pred_region
      %s47 = ssub.s32 256, 256
      %48 = vsyncadd [#allocation4], %s47
      %s50 = sshll.u32 [#allocation7], 4
      %s51 = int_to_ptr.vmem [resolvable:$true] %s50
      %53 = dma.vmem_to_hbm [thread:$0]  %s51, 256, %s2, [#allocation4]
    $region21: #{tpu_custom_call.1} parent=1 // pred_fallthru
      _
    // Predicated region
    $region22: #{tpu_custom_call.1} parent=1 // pred_check
      _
    $region23: #{tpu_custom_call.1} parent=1 // pred_check_branch
      %55 = sbr.rel (0) target = $region25
    $region24: #{tpu_custom_call.1} parent=1 // pred_region
      %56 = dma.done [#allocation4], 256
    $region25: #{tpu_custom_call.1} parent=1 // pred_fallthru
      _
    %57 = vsyncpa [#allocation3], 1
    %58 = vsyncpa [#allocation6], 1
    %59 = vsyncpa [#allocation4], 1

</llo_original>
